<compile_context>
chip_gen: v5e
topology: v5e:2x2
jax: 0.10.0
libtpu: 0.0.40
codegen_flags: <defaults>
</compile_context>

<pallas_src>
import jax
import jax.numpy as jnp
from jax.experimental import pallas as pl
from jax.experimental.pallas import tpu as pltpu


def _im2col(x, kh, kw):
    """x: (B, C, H, W) -> (B*Ho*Wo, C*kh*kw), feature ordering (C, kh, kw).
    Assumes stride=1, no padding, no dilation (matches nn.Conv2d(in, out, k))."""
    B, C, H, W = x.shape
    Ho, Wo = H - kh + 1, W - kw + 1
    slabs = []
    for i in range(kh):
        for j in range(kw):
            slabs.append(x[:, :, i:i + Ho, j:j + Wo])             # (B, C, Ho, Wo)
    p = jnp.stack(slabs, axis=2)                                   # (B, C, kh*kw, Ho, Wo)
    p = p.transpose(0, 3, 4, 1, 2).reshape(B * Ho * Wo, C * kh * kw)
    return p, Ho, Wo


def conv_gelu_mean(x, weight, bias):
    """x: (B, C_in, H, W) f32; weight: (C_out, C_in, kh, kw); bias: (C_out,)
    Returns (B, C_out) f32."""
    B = x.shape[0]
    C_out, C_in, kh, kw = weight.shape
    patches, Ho, Wo = _im2col(x.astype(jnp.float32), kh, kw)       # (B*P, K)
    P = Ho * Wo
    BP = B * P
    K = C_in * kh * kw
    inv_p = 1.0 / float(P)

    # Bias fusion: append a ones column to the patches and a bias row to the
    # flattened weight, so conv+bias is a single contraction of length K+1.
    patches_aug = jnp.concatenate(
        [patches, jnp.ones((BP, 1), jnp.float32)], axis=1)                     # (BP, K+1)
    w_flat = weight.reshape(C_out, K).T.astype(jnp.float32)                    # (K, C_out)
    w_aug = jnp.concatenate(
        [w_flat, bias.astype(jnp.float32).reshape(1, C_out)], axis=0)          # (K+1, C_out)

    # Constant block-diagonal pooling matrix: row b has 1/P over columns
    # [b*P, (b+1)*P).  pooled = pool @ gelu(conv)  ->  (B, C_out).
    pool = jnp.repeat(jnp.eye(B, dtype=jnp.float32), P, axis=1) * inv_p        # (B, BP)

    def kernel(p_ref, w_ref, pool_ref, o_ref):
        # p_ref: (BP, K+1)  w_ref: (K+1, C_out)  pool_ref: (B, BP)  o_ref: (B, C_out)
        y = jnp.dot(p_ref[...], w_ref[...],
                    preferred_element_type=jnp.float32)            # (BP, C_out)
        # "gelu_faster" from the reference CUDA kernel (no cubic term):
        g = 0.5 * y * (1.0 + jnp.tanh(0.7978845608028654 * y))
        # Average pool over spatial dims as one tiny MXU matmul (scale fused).
        o_ref[...] = jnp.dot(pool_ref[...], g,
                             preferred_element_type=jnp.float32)   # (B, C_out)

    out = pl.pallas_call(
        kernel,
        out_shape=jax.ShapeDtypeStruct((B, C_out), jnp.float32),
        grid=(1,),
        in_specs=[
            pl.BlockSpec((BP, K + 1), lambda i: (0, 0)),   # full patch matrix
            pl.BlockSpec((K + 1, C_out), lambda i: (0, 0)),  # weight (+ bias row)
            pl.BlockSpec((B, BP), lambda i: (0, 0)),       # pooling matrix
        ],
        out_specs=pl.BlockSpec((B, C_out), lambda i: (0, 0)),
        compiler_params=pltpu.CompilerParams(
            dimension_semantics=("arbitrary",)),
    )(patches_aug, w_aug, pool)

    return out


def _reference(x, weight, bias):
    """Pure-JAX reference: conv2d (valid, stride 1) -> gelu_faster -> spatial mean."""
    y = jax.lax.conv_general_dilated(
        x.astype(jnp.float32), weight.astype(jnp.float32),
        window_strides=(1, 1), padding="VALID",
        dimension_numbers=("NCHW", "OIHW", "NCHW"))
    y = y + bias.reshape(1, -1, 1, 1)
    g = 0.5 * y * (1.0 + jnp.tanh(0.7978845608028654 * y))
    return jnp.mean(g, axis=(2, 3))


if __name__ == "__main__":
    # Small shapes consistent with the module: B=2, C_in=4, H=W=16, C_out=8, k=3
    B, C_in, H, W = 2, 4, 16, 16
    C_out, ksize = 8, 3

    key = jax.random.PRNGKey(0)
    kx, kw, kb = jax.random.split(key, 3)

    x = jax.random.normal(kx, (B, C_in, H, W), dtype=jnp.float32)

    # Deterministic Conv2d-style init: U(-1/sqrt(fan_in), 1/sqrt(fan_in))
    fan_in = C_in * ksize * ksize
    bound = 1.0 / (fan_in ** 0.5)
    weight = jax.random.uniform(kw, (C_out, C_in, ksize, ksize),
                                dtype=jnp.float32, minval=-bound, maxval=bound)
    bias = jax.random.uniform(kb, (C_out,), dtype=jnp.float32,
                              minval=-bound, maxval=bound)

    out = conv_gelu_mean(x, weight, bias)
    jax.block_until_ready(out)
    assert out.shape == (B, C_out) and out.dtype == jnp.float32

    ref = _reference(x, weight, bias)
    jax.block_until_ready(ref)
    assert jnp.allclose(out, ref, atol=1e-4, rtol=1e-4), (
        f"max abs diff {float(jnp.max(jnp.abs(out - ref)))}")

    print("KERNEL_OK")
</pallas_src>

<mosaic_0001>
module attributes {stable_mosaic.version = 11 : i64} {
  func.func @kernel(%arg0: i32, %arg1: memref<392x37xf32, #tpu.memory_space<vmem>>, %arg2: memref<37x8xf32, #tpu.memory_space<vmem>>, %arg3: memref<2x392xf32, #tpu.memory_space<vmem>>, %arg4: memref<2x8xf32, #tpu.memory_space<vmem>>) attributes {dimension_semantics = [#tpu.dimension_semantics<arbitrary>], iteration_bounds = array<i64: 1>, scalar_prefetch = 0 : i64, scratch_operands = 0 : i64, tpu.core_type = #tpu.core_type<tc>, window_params = [{pipeline_mode = #tpu.pipeline_mode<synchronous>, transform_indices = @transform_0, window_bounds = array<i64: 392, 37>}, {pipeline_mode = #tpu.pipeline_mode<synchronous>, transform_indices = @transform_1, window_bounds = array<i64: 37, 8>}, {pipeline_mode = #tpu.pipeline_mode<synchronous>, transform_indices = @transform_2, window_bounds = array<i64: 2, 392>}, {pipeline_mode = #tpu.pipeline_mode<synchronous>, transform_indices = @transform_3, window_bounds = array<i64: 2, 8>}]} {
    %c0 = arith.constant 0 : index
    %c0_0 = arith.constant 0 : index
    %0 = vector.load %arg1[%c0, %c0_0] : memref<392x37xf32, #tpu.memory_space<vmem>>, vector<392x37xf32>
    %c0_1 = arith.constant 0 : index
    %c0_2 = arith.constant 0 : index
    %1 = vector.load %arg2[%c0_1, %c0_2] : memref<37x8xf32, #tpu.memory_space<vmem>>, vector<37x8xf32>
    %cst = arith.constant dense<0.000000e+00> : vector<392x8xf32>
    %2 = tpu.matmul %0, %1, %cst {dimension_numbers = #tpu.dot_dimension_numbers<[1], [0], [0], [1], [0, 0, 1, 1], [], []>} : vector<392x37xf32>, vector<37x8xf32>, vector<392x8xf32> -> vector<392x8xf32>
    %cst_3 = arith.constant 5.000000e-01 : f32
    %3 = vector.broadcast %cst_3 : f32 to vector<392x8xf32>
    %4 = arith.mulf %3, %2 : vector<392x8xf32>
    %cst_4 = arith.constant 0.797884583 : f32
    %5 = vector.broadcast %cst_4 : f32 to vector<392x8xf32>
    %6 = arith.mulf %5, %2 : vector<392x8xf32>
    %7 = math.tanh %6 : vector<392x8xf32>
    %cst_5 = arith.constant 1.000000e+00 : f32
    %8 = vector.broadcast %cst_5 : f32 to vector<392x8xf32>
    %9 = arith.addf %8, %7 : vector<392x8xf32>
    %10 = arith.mulf %4, %9 : vector<392x8xf32>
    %c0_6 = arith.constant 0 : index
    %c0_7 = arith.constant 0 : index
    %11 = vector.load %arg3[%c0_6, %c0_7] : memref<2x392xf32, #tpu.memory_space<vmem>>, vector<2x392xf32>
    %cst_8 = arith.constant dense<0.000000e+00> : vector<2x8xf32>
    %12 = tpu.matmul %11, %10, %cst_8 {dimension_numbers = #tpu.dot_dimension_numbers<[1], [0], [0], [1], [0, 0, 1, 1], [], []>} : vector<2x392xf32>, vector<392x8xf32>, vector<2x8xf32> -> vector<2x8xf32>
    %c0_9 = arith.constant 0 : index
    %c0_10 = arith.constant 0 : index
    %13 = vector.load %arg4[%c0_9, %c0_10] : memref<2x8xf32, #tpu.memory_space<vmem>>, vector<2x8xf32>
    tpu.vector_store %arg4[%c0_9, %c0_10], %12 {strides = array<i32>} : memref<2x8xf32, #tpu.memory_space<vmem>>, vector<2x8xf32>,
    return
  }
  func.func @transform_0(%arg0: i32) -> (i32, i32) {
    %c0_i32 = arith.constant 0 : i32
    %c0_i32_0 = arith.constant 0 : i32
    %c0_i32_1 = arith.constant 0 : i32
    return %c0_i32, %c0_i32_0 : i32, i32
  }
  func.func @transform_1(%arg0: i32) -> (i32, i32) {
    %c0_i32 = arith.constant 0 : i32
    %c0_i32_0 = arith.constant 0 : i32
    %c0_i32_1 = arith.constant 0 : i32
    return %c0_i32, %c0_i32_0 : i32, i32
  }
  func.func @transform_2(%arg0: i32) -> (i32, i32) {
    %c0_i32 = arith.constant 0 : i32
    %c0_i32_0 = arith.constant 0 : i32
    %c0_i32_1 = arith.constant 0 : i32
    return %c0_i32, %c0_i32_0 : i32, i32
  }
  func.func @transform_3(%arg0: i32) -> (i32, i32) {
    %c0_i32 = arith.constant 0 : i32
    %c0_i32_0 = arith.constant 0 : i32
    %c0_i32_1 = arith.constant 0 : i32
    return %c0_i32, %c0_i32_0 : i32, i32
  }
}

</mosaic_0001>

<llo_original>
// kernel: tpu_custom_call.1
$region0: #{tpu_custom_call.1}
  #allocation0 [shape = 'u32[]', space=smem, size = 0x4, offset = 0x4, fixed_abs, tag = 'smem constant byte address 0x4 - core index']
  #allocation1 [shape = 'u32[72,128]{1,0:T(1,128)}', space=vmem, size = 0x9000, scoped, tag = 'internal scratch']
  %s0 = inlined_call_operand.vmem [shape: f32[392,37], index: 0, kind: input, shape index: {}]
  %s1 = inlined_call_operand.vmem [shape: f32[37,8], index: 1, kind: input, shape index: {}]
  %s2 = inlined_call_operand.vmem [shape: f32[2,392], index: 2, kind: input, shape index: {}]
  %s3 = inlined_call_operand.hbm [shape: f32[2,8], index: 3, kind: output, shape index: {}]
  %s4 = sld [smem:[#allocation0]]
  $region22: #{tpu_custom_call.1} parent=0
    _
  %s6 = ssub.s32 1, %s4
  %s7 = scalar_select 0, %s6, %s4
  $region1: #{tpu_custom_call.1} parent=0
    #allocation2 [shape = 'u8[1024]{0}', space=vmem, size = 0x400, scoped, tag = 'output window, operand 0, single buffered']
    #allocation3 [shape = 's32[1]{0}', space=sflag, size = 0x4, scoped, tag = 'scoped memory for tpu_custom_call.1']
    %8 = vsyncpa [#allocation3], 0
    // Predicated region
    $region2: #{tpu_custom_call.1} parent=1 // pred_check
      _
    $region3: #{tpu_custom_call.1} parent=1 // pred_check_branch
      %10 = sbr.rel (0) target = $region5
    $region4: #{tpu_custom_call.1} parent=1 // pred_region
      _
    $region5: #{tpu_custom_call.1} parent=1 // pred_fallthru
      _
    // Predicated region
    $region6: #{tpu_custom_call.1} parent=1 // pred_check
      _
    $region7: #{tpu_custom_call.1} parent=1 // pred_check_branch
      %12 = sbr.rel (0) target = $region9
    $region8: #{tpu_custom_call.1} parent=1 // pred_region
      _
    $region9: #{tpu_custom_call.1} parent=1 // pred_fallthru
      _
    // Predicated region
    $region10: #{tpu_custom_call.1} parent=1 // pred_check
      _
    $region11: #{tpu_custom_call.1} parent=1 // pred_check_branch
      %14 = sbr.rel (0) target = $region13
    $region12: #{tpu_custom_call.1} parent=1 // pred_region
      _
    $region13: #{tpu_custom_call.1} parent=1 // pred_fallthru
      _
    %v15 = vld [vmem:[%s0] sm:$0xff]
    %v16 = vld [vmem:[%s0 + $0x8] sm:$0xff]
    %v17 = vld [vmem:[%s0 + $0x10] sm:$0xff]
    %v18 = vld [vmem:[%s0 + $0x18] sm:$0xff]
    %v19 = vld [vmem:[%s0 + $0x20] sm:$0xff]
    %v20 = vld [vmem:[%s0 + $0x28] sm:$0xff]
    %v21 = vld [vmem:[%s0 + $0x30] sm:$0xff]
    %v22 = vld [vmem:[%s0 + $0x38] sm:$0xff]
    %v23 = vld [vmem:[%s0 + $0x40] sm:$0xff]
    %v24 = vld [vmem:[%s0 + $0x48] sm:$0xff]
    %v25 = vld [vmem:[%s0 + $0x50] sm:$0xff]
    %v26 = vld [vmem:[%s0 + $0x58] sm:$0xff]
    %v27 = vld [vmem:[%s0 + $0x60] sm:$0xff]
    %v28 = vld [vmem:[%s0 + $0x68] sm:$0xff]
    %v29 = vld [vmem:[%s0 + $0x70] sm:$0xff]
    %v30 = vld [vmem:[%s0 + $0x78] sm:$0xff]
    %v31 = vld [vmem:[%s0 + $0x80] sm:$0xff]
    %v32 = vld [vmem:[%s0 + $0x88] sm:$0xff]
    %v33 = vld [vmem:[%s0 + $0x90] sm:$0xff]
    %v34 = vld [vmem:[%s0 + $0x98] sm:$0xff]
    %v35 = vld [vmem:[%s0 + $0xa0] sm:$0xff]
    %v36 = vld [vmem:[%s0 + $0xa8] sm:$0xff]
    %v37 = vld [vmem:[%s0 + $0xb0] sm:$0xff]
    %v38 = vld [vmem:[%s0 + $0xb8] sm:$0xff]
    %v39 = vld [vmem:[%s0 + $0xc0] sm:$0xff]
    %v40 = vld [vmem:[%s0 + $0xc8] sm:$0xff]
    %v41 = vld [vmem:[%s0 + $0xd0] sm:$0xff]
    %v42 = vld [vmem:[%s0 + $0xd8] sm:$0xff]
    %v43 = vld [vmem:[%s0 + $0xe0] sm:$0xff]
    %v44 = vld [vmem:[%s0 + $0xe8] sm:$0xff]
    %v45 = vld [vmem:[%s0 + $0xf0] sm:$0xff]
    %v46 = vld [vmem:[%s0 + $0xf8] sm:$0xff]
    %v47 = vld [vmem:[%s0 + $0x100] sm:$0xff]
    %v48 = vld [vmem:[%s0 + $0x108] sm:$0xff]
    %v49 = vld [vmem:[%s0 + $0x110] sm:$0xff]
    %v50 = vld [vmem:[%s0 + $0x118] sm:$0xff]
    %v51 = vld [vmem:[%s0 + $0x120] sm:$0xff]
    %v52 = vld [vmem:[%s0 + $0x128] sm:$0xff]
    %v53 = vld [vmem:[%s0 + $0x130] sm:$0xff]
    %v54 = vld [vmem:[%s0 + $0x138] sm:$0xff]
    %v55 = vld [vmem:[%s0 + $0x140] sm:$0xff]
    %v56 = vld [vmem:[%s0 + $0x148] sm:$0xff]
    %v57 = vld [vmem:[%s0 + $0x150] sm:$0xff]
    %v58 = vld [vmem:[%s0 + $0x158] sm:$0xff]
    %v59 = vld [vmem:[%s0 + $0x160] sm:$0xff]
    %v60 = vld [vmem:[%s0 + $0x168] sm:$0xff]
    %v61 = vld [vmem:[%s0 + $0x170] sm:$0xff]
    %v62 = vld [vmem:[%s0 + $0x178] sm:$0xff]
    %v63 = vld [vmem:[%s0 + $0x180] sm:$0xff]
    %v64 = vld [vmem:[%s1] sm:$0xff]
    %v65 = vld [vmem:[%s1 + $0x8] sm:$0xff]
    %v66 = vld [vmem:[%s1 + $0x10] sm:$0xff]
    %v67 = vld [vmem:[%s1 + $0x18] sm:$0xff]
    %v68 = vld [vmem:[%s1 + $0x20] sm:$0x1f]
    %vm69 = vcmask 302080
    %v71 = vsel %vm69, %v15, 0
    %v74 = vsel %vm69, %v16, 0
    %v77 = vsel %vm69, %v17, 0
    %v80 = vsel %vm69, %v18, 0
    %v83 = vsel %vm69, %v19, 0
    %v86 = vsel %vm69, %v20, 0
    %v89 = vsel %vm69, %v21, 0
    %v92 = vsel %vm69, %v22, 0
    %v95 = vsel %vm69, %v23, 0
    %v98 = vsel %vm69, %v24, 0
    %v101 = vsel %vm69, %v25, 0
    %v104 = vsel %vm69, %v26, 0
    %v107 = vsel %vm69, %v27, 0
    %v110 = vsel %vm69, %v28, 0
    %v113 = vsel %vm69, %v29, 0
    %v116 = vsel %vm69, %v30, 0
    %v119 = vsel %vm69, %v31, 0
    %v122 = vsel %vm69, %v32, 0
    %v125 = vsel %vm69, %v33, 0
    %v128 = vsel %vm69, %v34, 0
    %v131 = vsel %vm69, %v35, 0
    %v134 = vsel %vm69, %v36, 0
    %v137 = vsel %vm69, %v37, 0
    %v140 = vsel %vm69, %v38, 0
    %v143 = vsel %vm69, %v39, 0
    %v146 = vsel %vm69, %v40, 0
    %v149 = vsel %vm69, %v41, 0
    %v152 = vsel %vm69, %v42, 0
    %v155 = vsel %vm69, %v43, 0
    %v158 = vsel %vm69, %v44, 0
    %v161 = vsel %vm69, %v45, 0
    %v164 = vsel %vm69, %v46, 0
    %v167 = vsel %vm69, %v47, 0
    %v170 = vsel %vm69, %v48, 0
    %v173 = vsel %vm69, %v49, 0
    %v176 = vsel %vm69, %v50, 0
    %v179 = vsel %vm69, %v51, 0
    %v182 = vsel %vm69, %v52, 0
    %v185 = vsel %vm69, %v53, 0
    %v188 = vsel %vm69, %v54, 0
    %v191 = vsel %vm69, %v55, 0
    %v194 = vsel %vm69, %v56, 0
    %v197 = vsel %vm69, %v57, 0
    %v200 = vsel %vm69, %v58, 0
    %v203 = vsel %vm69, %v59, 0
    %v206 = vsel %vm69, %v60, 0
    %v209 = vsel %vm69, %v61, 0
    %v212 = vsel %vm69, %v62, 0
    %v215 = vsel %vm69, %v63, 0
    %vm217 = vcmask 1044480
    %v219 = vsel %vm217, %v68, 0
    %221 = vmatpush.msra.mxu0 0.0
    %222 = vmatpush.msra.mxu0 0.0
    %223 = vmatpush.msra.mxu0 0.0
    %224 = vmatpush.msra.mxu0 0.0
    %225 = vmatpush.msra.mxu0 0.0
    %226 = vmatpush.msra.mxu0 0.0
    %227 = vmatpush.msra.mxu0 0.0
    %228 = vmatpush.msra.mxu0 0.0
    %229 = vmatpush.msra.mxu0 0.0
    %230 = vmatpush.msra.mxu0 0.0
    %231 = vmatpush.msra.mxu0 0.0
    %232 = vmatpush.msra.mxu0 %v219
    %233 = vmatpush.msra.mxu0 %v67
    %234 = vmatpush.msra.mxu0 %v66
    %235 = vmatpush.msra.mxu0 %v65
    %236 = vmatpush.msra.mxu0 %v64
    %237 = vmatmul.f32.gmra.mxu0 %v71
    %v238 = vpop.f32.mrf.mxu0
    %v239 = vadd.f32 0.0, %v238
    %240 = vmatmul.f32.gmra.mxu0 %v74
    %v241 = vpop.f32.mrf.mxu0
    %v242 = vadd.f32 0.0, %v241
    %243 = vmatmul.f32.gmra.mxu0 %v77
    %v244 = vpop.f32.mrf.mxu0
    %v245 = vadd.f32 0.0, %v244
    %246 = vmatmul.f32.gmra.mxu0 %v80
    %v247 = vpop.f32.mrf.mxu0
    %v248 = vadd.f32 0.0, %v247
    %249 = vmatmul.f32.gmra.mxu0 %v83
    %v250 = vpop.f32.mrf.mxu0
    %v251 = vadd.f32 0.0, %v250
    %252 = vmatmul.f32.gmra.mxu0 %v86
    %v253 = vpop.f32.mrf.mxu0
    %v254 = vadd.f32 0.0, %v253
    %255 = vmatmul.f32.gmra.mxu0 %v89
    %v256 = vpop.f32.mrf.mxu0
    %v257 = vadd.f32 0.0, %v256
    %258 = vmatmul.f32.gmra.mxu0 %v92
    %v259 = vpop.f32.mrf.mxu0
    %v260 = vadd.f32 0.0, %v259
    %261 = vmatmul.f32.gmra.mxu0 %v95
    %v262 = vpop.f32.mrf.mxu0
    %v263 = vadd.f32 0.0, %v262
    %264 = vmatmul.f32.gmra.mxu0 %v98
    %v265 = vpop.f32.mrf.mxu0
    %v266 = vadd.f32 0.0, %v265
    %267 = vmatmul.f32.gmra.mxu0 %v101
    %v268 = vpop.f32.mrf.mxu0
    %v269 = vadd.f32 0.0, %v268
    %270 = vmatmul.f32.gmra.mxu0 %v104
    %v271 = vpop.f32.mrf.mxu0
    %v272 = vadd.f32 0.0, %v271
    %273 = vmatmul.f32.gmra.mxu0 %v107
    %v274 = vpop.f32.mrf.mxu0
    %v275 = vadd.f32 0.0, %v274
    %276 = vmatmul.f32.gmra.mxu0 %v110
    %v277 = vpop.f32.mrf.mxu0
    %v278 = vadd.f32 0.0, %v277
    %279 = vmatmul.f32.gmra.mxu0 %v113
    %v280 = vpop.f32.mrf.mxu0
    %v281 = vadd.f32 0.0, %v280
    %282 = vmatmul.f32.gmra.mxu0 %v116
    %v283 = vpop.f32.mrf.mxu0
    %v284 = vadd.f32 0.0, %v283
    %285 = vmatmul.f32.gmra.mxu0 %v119
    %v286 = vpop.f32.mrf.mxu0
    %v287 = vadd.f32 0.0, %v286
    %288 = vmatmul.f32.gmra.mxu0 %v122
    %v289 = vpop.f32.mrf.mxu0
    %v290 = vadd.f32 0.0, %v289
    %291 = vmatmul.f32.gmra.mxu0 %v125
    %v292 = vpop.f32.mrf.mxu0
    %v293 = vadd.f32 0.0, %v292
    %294 = vmatmul.f32.gmra.mxu0 %v128
    %v295 = vpop.f32.mrf.mxu0
    %v296 = vadd.f32 0.0, %v295
    %297 = vmatmul.f32.gmra.mxu0 %v131
    %v298 = vpop.f32.mrf.mxu0
    %v299 = vadd.f32 0.0, %v298
    %300 = vmatmul.f32.gmra.mxu0 %v134
    %v301 = vpop.f32.mrf.mxu0
    %v302 = vadd.f32 0.0, %v301
    %303 = vmatmul.f32.gmra.mxu0 %v137
    %v304 = vpop.f32.mrf.mxu0
    %v305 = vadd.f32 0.0, %v304
    %306 = vmatmul.f32.gmra.mxu0 %v140
    %v307 = vpop.f32.mrf.mxu0
    %v308 = vadd.f32 0.0, %v307
    %309 = vmatmul.f32.gmra.mxu0 %v143
    %v310 = vpop.f32.mrf.mxu0
    %v311 = vadd.f32 0.0, %v310
    %312 = vmatmul.f32.gmra.mxu0 %v146
    %v313 = vpop.f32.mrf.mxu0
    %v314 = vadd.f32 0.0, %v313
    %315 = vmatmul.f32.gmra.mxu0 %v149
    %v316 = vpop.f32.mrf.mxu0
    %v317 = vadd.f32 0.0, %v316
    %318 = vmatmul.f32.gmra.mxu0 %v152
    %v319 = vpop.f32.mrf.mxu0
    %v320 = vadd.f32 0.0, %v319
    %321 = vmatmul.f32.gmra.mxu0 %v155
    %v322 = vpop.f32.mrf.mxu0
    %v323 = vadd.f32 0.0, %v322
    %324 = vmatmul.f32.gmra.mxu0 %v158
    %v325 = vpop.f32.mrf.mxu0
    %v326 = vadd.f32 0.0, %v325
    %327 = vmatmul.f32.gmra.mxu0 %v161
    %v328 = vpop.f32.mrf.mxu0
    %v329 = vadd.f32 0.0, %v328
    %330 = vmatmul.f32.gmra.mxu0 %v164
    %v331 = vpop.f32.mrf.mxu0
    %v332 = vadd.f32 0.0, %v331
    %333 = vmatmul.f32.gmra.mxu0 %v167
    %v334 = vpop.f32.mrf.mxu0
    %v335 = vadd.f32 0.0, %v334
    %336 = vmatmul.f32.gmra.mxu0 %v170
    %v337 = vpop.f32.mrf.mxu0
    %v338 = vadd.f32 0.0, %v337
    %339 = vmatmul.f32.gmra.mxu0 %v173
    %v340 = vpop.f32.mrf.mxu0
    %v341 = vadd.f32 0.0, %v340
    %342 = vmatmul.f32.gmra.mxu0 %v176
    %v343 = vpop.f32.mrf.mxu0
    %v344 = vadd.f32 0.0, %v343
    %345 = vmatmul.f32.gmra.mxu0 %v179
    %v346 = vpop.f32.mrf.mxu0
    %v347 = vadd.f32 0.0, %v346
    %348 = vmatmul.f32.gmra.mxu0 %v182
    %v349 = vpop.f32.mrf.mxu0
    %v350 = vadd.f32 0.0, %v349
    %351 = vmatmul.f32.gmra.mxu0 %v185
    %v352 = vpop.f32.mrf.mxu0
    %v353 = vadd.f32 0.0, %v352
    %354 = vmatmul.f32.gmra.mxu0 %v188
    %v355 = vpop.f32.mrf.mxu0
    %v356 = vadd.f32 0.0, %v355
    %357 = vmatmul.f32.gmra.mxu0 %v191
    %v358 = vpop.f32.mrf.mxu0
    %v359 = vadd.f32 0.0, %v358
    %360 = vmatmul.f32.gmra.mxu0 %v194
    %v361 = vpop.f32.mrf.mxu0
    %v362 = vadd.f32 0.0, %v361
    %363 = vmatmul.f32.gmra.mxu0 %v197
    %v364 = vpop.f32.mrf.mxu0
    %v365 = vadd.f32 0.0, %v364
    %366 = vmatmul.f32.gmra.mxu0 %v200
    %v367 = vpop.f32.mrf.mxu0
    %v368 = vadd.f32 0.0, %v367
    %369 = vmatmul.f32.gmra.mxu0 %v203
    %v370 = vpop.f32.mrf.mxu0
    %v371 = vadd.f32 0.0, %v370
    %372 = vmatmul.f32.gmra.mxu0 %v206
    %v373 = vpop.f32.mrf.mxu0
    %v374 = vadd.f32 0.0, %v373
    %375 = vmatmul.f32.gmra.mxu0 %v209
    %v376 = vpop.f32.mrf.mxu0
    %v377 = vadd.f32 0.0, %v376
    %378 = vmatmul.f32.gmra.mxu0 %v212
    %v379 = vpop.f32.mrf.mxu0
    %v380 = vadd.f32 0.0, %v379
    %381 = vmatmul.f32.gmra.mxu0 %v215
    %v382 = vpop.f32.mrf.mxu0
    %v383 = vadd.f32 0.0, %v382
    %384 = vdwg.mxu0
    %v385 = vmul.f32 %v239, 0.5
    %v386 = vmul.f32 %v242, 0.5
    %v387 = vmul.f32 %v245, 0.5
    %v388 = vmul.f32 %v248, 0.5
    %v389 = vmul.f32 %v251, 0.5
    %v390 = vmul.f32 %v254, 0.5
    %v391 = vmul.f32 %v257, 0.5
    %v392 = vmul.f32 %v260, 0.5
    %v393 = vmul.f32 %v263, 0.5
    %v394 = vmul.f32 %v266, 0.5
    %v395 = vmul.f32 %v269, 0.5
    %v396 = vmul.f32 %v272, 0.5
    %v397 = vmul.f32 %v275, 0.5
    %v398 = vmul.f32 %v278, 0.5
    %v399 = vmul.f32 %v281, 0.5
    %v400 = vmul.f32 %v284, 0.5
    %v401 = vmul.f32 %v287, 0.5
    %v402 = vmul.f32 %v290, 0.5
    %v403 = vmul.f32 %v293, 0.5
    %v404 = vmul.f32 %v296, 0.5
    %v405 = vmul.f32 %v299, 0.5
    %v406 = vmul.f32 %v302, 0.5
    %v407 = vmul.f32 %v305, 0.5
    %v408 = vmul.f32 %v308, 0.5
    %v409 = vmul.f32 %v311, 0.5
    %v410 = vmul.f32 %v314, 0.5
    %v411 = vmul.f32 %v317, 0.5
    %v412 = vmul.f32 %v320, 0.5
    %v413 = vmul.f32 %v323, 0.5
    %v414 = vmul.f32 %v326, 0.5
    %v415 = vmul.f32 %v329, 0.5
    %v416 = vmul.f32 %v332, 0.5
    %v417 = vmul.f32 %v335, 0.5
    %v418 = vmul.f32 %v338, 0.5
    %v419 = vmul.f32 %v341, 0.5
    %v420 = vmul.f32 %v344, 0.5
    %v421 = vmul.f32 %v347, 0.5
    %v422 = vmul.f32 %v350, 0.5
    %v423 = vmul.f32 %v353, 0.5
    %v424 = vmul.f32 %v356, 0.5
    %v425 = vmul.f32 %v359, 0.5
    %v426 = vmul.f32 %v362, 0.5
    %v427 = vmul.f32 %v365, 0.5
    %v428 = vmul.f32 %v368, 0.5
    %v429 = vmul.f32 %v371, 0.5
    %v430 = vmul.f32 %v374, 0.5
    %v431 = vmul.f32 %v377, 0.5
    %v432 = vmul.f32 %v380, 0.5
    %v433 = vmul.f32 %v383, 0.5
    %v434 = vmul.f32 %v239, 0.7978846
    %v435 = vmul.f32 %v242, 0.7978846
    %v436 = vmul.f32 %v245, 0.7978846
    %v437 = vmul.f32 %v248, 0.7978846
    %v438 = vmul.f32 %v251, 0.7978846
    %v439 = vmul.f32 %v254, 0.7978846
    %v440 = vmul.f32 %v257, 0.7978846
    %v441 = vmul.f32 %v260, 0.7978846
    %v442 = vmul.f32 %v263, 0.7978846
    %v443 = vmul.f32 %v266, 0.7978846
    %v444 = vmul.f32 %v269, 0.7978846
    %v445 = vmul.f32 %v272, 0.7978846
    %v446 = vmul.f32 %v275, 0.7978846
    %v447 = vmul.f32 %v278, 0.7978846
    %v448 = vmul.f32 %v281, 0.7978846
    %v449 = vmul.f32 %v284, 0.7978846
    %v450 = vmul.f32 %v287, 0.7978846
    %v451 = vmul.f32 %v290, 0.7978846
    %v452 = vmul.f32 %v293, 0.7978846
    %v453 = vmul.f32 %v296, 0.7978846
    %v454 = vmul.f32 %v299, 0.7978846
    %v455 = vmul.f32 %v302, 0.7978846
    %v456 = vmul.f32 %v305, 0.7978846
    %v457 = vmul.f32 %v308, 0.7978846
    %v458 = vmul.f32 %v311, 0.7978846
    %v459 = vmul.f32 %v314, 0.7978846
    %v460 = vmul.f32 %v317, 0.7978846
    %v461 = vmul.f32 %v320, 0.7978846
    %v462 = vmul.f32 %v323, 0.7978846
    %v463 = vmul.f32 %v326, 0.7978846
    %v464 = vmul.f32 %v329, 0.7978846
    %v465 = vmul.f32 %v332, 0.7978846
    %v466 = vmul.f32 %v335, 0.7978846
    %v467 = vmul.f32 %v338, 0.7978846
    %v468 = vmul.f32 %v341, 0.7978846
    %v469 = vmul.f32 %v344, 0.7978846
    %v470 = vmul.f32 %v347, 0.7978846
    %v471 = vmul.f32 %v350, 0.7978846
    %v472 = vmul.f32 %v353, 0.7978846
    %v473 = vmul.f32 %v356, 0.7978846
    %v474 = vmul.f32 %v359, 0.7978846
    %v475 = vmul.f32 %v362, 0.7978846
    %v476 = vmul.f32 %v365, 0.7978846
    %v477 = vmul.f32 %v368, 0.7978846
    %v478 = vmul.f32 %v371, 0.7978846
    %v479 = vmul.f32 %v374, 0.7978846
    %v480 = vmul.f32 %v377, 0.7978846
    %v481 = vmul.f32 %v380, 0.7978846
    %v482 = vmul.f32 %v383, 0.7978846
    %v483 = vtanh.pop %v434
    %v484 = vtanh.pop %v435
    %v485 = vtanh.pop %v436
    %v486 = vtanh.pop %v437
    %v487 = vtanh.pop %v438
    %v488 = vtanh.pop %v439
    %v489 = vtanh.pop %v440
    %v490 = vtanh.pop %v441
    %v491 = vtanh.pop %v442
    %v492 = vtanh.pop %v443
    %v493 = vtanh.pop %v444
    %v494 = vtanh.pop %v445
    %v495 = vtanh.pop %v446
    %v496 = vtanh.pop %v447
    %v497 = vtanh.pop %v448
    %v498 = vtanh.pop %v449
    %v499 = vtanh.pop %v450
    %v500 = vtanh.pop %v451
    %v501 = vtanh.pop %v452
    %v502 = vtanh.pop %v453
    %v503 = vtanh.pop %v454
    %v504 = vtanh.pop %v455
    %v505 = vtanh.pop %v456
    %v506 = vtanh.pop %v457
    %v507 = vtanh.pop %v458
    %v508 = vtanh.pop %v459
    %v509 = vtanh.pop %v460
    %v510 = vtanh.pop %v461
    %v511 = vtanh.pop %v462
    %v512 = vtanh.pop %v463
    %v513 = vtanh.pop %v464
    %v514 = vtanh.pop %v465
    %v515 = vtanh.pop %v466
    %v516 = vtanh.pop %v467
    %v517 = vtanh.pop %v468
    %v518 = vtanh.pop %v469
    %v519 = vtanh.pop %v470
    %v520 = vtanh.pop %v471
    %v521 = vtanh.pop %v472
    %v522 = vtanh.pop %v473
    %v523 = vtanh.pop %v474
    %v524 = vtanh.pop %v475
    %v525 = vtanh.pop %v476
    %v526 = vtanh.pop %v477
    %v527 = vtanh.pop %v478
    %v528 = vtanh.pop %v479
    %v529 = vtanh.pop %v480
    %v530 = vtanh.pop %v481
    %v531 = vtanh.pop %v482
    %v532 = vadd.f32 %v483, 1.0
    %v533 = vadd.f32 %v484, 1.0
    %v534 = vadd.f32 %v485, 1.0
    %v535 = vadd.f32 %v486, 1.0
    %v536 = vadd.f32 %v487, 1.0
    %v537 = vadd.f32 %v488, 1.0
    %v538 = vadd.f32 %v489, 1.0
    %v539 = vadd.f32 %v490, 1.0
    %v540 = vadd.f32 %v491, 1.0
    %v541 = vadd.f32 %v492, 1.0
    %v542 = vadd.f32 %v493, 1.0
    %v543 = vadd.f32 %v494, 1.0
    %v544 = vadd.f32 %v495, 1.0
    %v545 = vadd.f32 %v496, 1.0
    %v546 = vadd.f32 %v497, 1.0
    %v547 = vadd.f32 %v498, 1.0
    %v548 = vadd.f32 %v499, 1.0
    %v549 = vadd.f32 %v500, 1.0
    %v550 = vadd.f32 %v501, 1.0
    %v551 = vadd.f32 %v502, 1.0
    %v552 = vadd.f32 %v503, 1.0
    %v553 = vadd.f32 %v504, 1.0
    %v554 = vadd.f32 %v505, 1.0
    %v555 = vadd.f32 %v506, 1.0
    %v556 = vadd.f32 %v507, 1.0
    %v557 = vadd.f32 %v508, 1.0
    %v558 = vadd.f32 %v509, 1.0
    %v559 = vadd.f32 %v510, 1.0
    %v560 = vadd.f32 %v511, 1.0
    %v561 = vadd.f32 %v512, 1.0
    %v562 = vadd.f32 %v513, 1.0
    %v563 = vadd.f32 %v514, 1.0
    %v564 = vadd.f32 %v515, 1.0
    %v565 = vadd.f32 %v516, 1.0
    %v566 = vadd.f32 %v517, 1.0
    %v567 = vadd.f32 %v518, 1.0
    %v568 = vadd.f32 %v519, 1.0
    %v569 = vadd.f32 %v520, 1.0
    %v570 = vadd.f32 %v521, 1.0
    %v571 = vadd.f32 %v522, 1.0
    %v572 = vadd.f32 %v523, 1.0
    %v573 = vadd.f32 %v524, 1.0
    %v574 = vadd.f32 %v525, 1.0
    %v575 = vadd.f32 %v526, 1.0
    %v576 = vadd.f32 %v527, 1.0
    %v577 = vadd.f32 %v528, 1.0
    %v578 = vadd.f32 %v529, 1.0
    %v579 = vadd.f32 %v530, 1.0
    %v580 = vadd.f32 %v531, 1.0
    %v581 = vmul.f32 %v385, %v532
    %v582 = vmul.f32 %v386, %v533
    %v583 = vmul.f32 %v387, %v534
    %v584 = vmul.f32 %v388, %v535
    %v585 = vmul.f32 %v389, %v536
    %v586 = vmul.f32 %v390, %v537
    %v587 = vmul.f32 %v391, %v538
    %v588 = vmul.f32 %v392, %v539
    %v589 = vmul.f32 %v393, %v540
    %v590 = vmul.f32 %v394, %v541
    %v591 = vmul.f32 %v395, %v542
    %v592 = vmul.f32 %v396, %v543
    %v593 = vmul.f32 %v397, %v544
    %v594 = vmul.f32 %v398, %v545
    %v595 = vmul.f32 %v399, %v546
    %v596 = vmul.f32 %v400, %v547
    %v597 = vmul.f32 %v401, %v548
    %v598 = vmul.f32 %v402, %v549
    %v599 = vmul.f32 %v403, %v550
    %v600 = vmul.f32 %v404, %v551
    %v601 = vmul.f32 %v405, %v552
    %v602 = vmul.f32 %v406, %v553
    %v603 = vmul.f32 %v407, %v554
    %v604 = vmul.f32 %v408, %v555
    %v605 = vmul.f32 %v409, %v556
    %v606 = vmul.f32 %v410, %v557
    %v607 = vmul.f32 %v411, %v558
    %v608 = vmul.f32 %v412, %v559
    %v609 = vmul.f32 %v413, %v560
    %v610 = vmul.f32 %v414, %v561
    %v611 = vmul.f32 %v415, %v562
    %v612 = vmul.f32 %v416, %v563
    %v613 = vmul.f32 %v417, %v564
    %v614 = vmul.f32 %v418, %v565
    %v615 = vmul.f32 %v419, %v566
    %v616 = vmul.f32 %v420, %v567
    %v617 = vmul.f32 %v421, %v568
    %v618 = vmul.f32 %v422, %v569
    %v619 = vmul.f32 %v423, %v570
    %v620 = vmul.f32 %v424, %v571
    %v621 = vmul.f32 %v425, %v572
    %v622 = vmul.f32 %v426, %v573
    %v623 = vmul.f32 %v427, %v574
    %v624 = vmul.f32 %v428, %v575
    %v625 = vmul.f32 %v429, %v576
    %v626 = vmul.f32 %v430, %v577
    %v627 = vmul.f32 %v431, %v578
    %v628 = vmul.f32 %v432, %v579
    %v629 = vmul.f32 %v433, %v580
    %v630 = vld [vmem:[%s2] sm:$0xff]
    %632 = vst [vmem:[#allocation1] ss:$4 sm:$0xff] %v630
    %v633 = vld.sshfl [vmem:[#allocation1] sm:$0xff pattern:$0x73625140]
    %v634 = vld.sshfl [vmem:[#allocation1 + $0x8] sm:$0xff pattern:$0x73625140]
    %v635 = vld.sshfl [vmem:[#allocation1 + $0x10] sm:$0xff pattern:$0x73625140]
    %v636 = vld.sshfl [vmem:[#allocation1 + $0x18] sm:$0xff pattern:$0x73625140]
    %vm640 = vcmask 64512
    %v641 = vsel %vm640, %v636, 0
    %643 = vmatpush.msra.mxu0 %v596
    %644 = vmatpush.msra.mxu0 %v595
    %645 = vmatpush.msra.mxu0 %v594
    %646 = vmatpush.msra.mxu0 %v593
    %647 = vmatpush.msra.mxu0 %v592
    %648 = vmatpush.msra.mxu0 %v591
    %649 = vmatpush.msra.mxu0 %v590
    %650 = vmatpush.msra.mxu0 %v589
    %651 = vmatpush.msra.mxu0 %v588
    %652 = vmatpush.msra.mxu0 %v587
    %653 = vmatpush.msra.mxu0 %v586
    %654 = vmatpush.msra.mxu0 %v585
    %655 = vmatpush.msra.mxu0 %v584
    %656 = vmatpush.msra.mxu0 %v583
    %657 = vmatpush.msra.mxu0 %v582
    %658 = vmatpush.msra.mxu0 %v581
    %659 = vmatmul.f32.gmra.mxu0 %v633
    %v660 = vpop.f32.mrf.mxu0
    %v661 = vadd.f32 0.0, %v660
    %662 = vdwg.mxu0
    %663 = vmatpush.msra.mxu0 %v612
    %664 = vmatpush.msra.mxu0 %v611
    %665 = vmatpush.msra.mxu0 %v610
    %666 = vmatpush.msra.mxu0 %v609
    %667 = vmatpush.msra.mxu0 %v608
    %668 = vmatpush.msra.mxu0 %v607
    %669 = vmatpush.msra.mxu0 %v606
    %670 = vmatpush.msra.mxu0 %v605
    %671 = vmatpush.msra.mxu0 %v604
    %672 = vmatpush.msra.mxu0 %v603
    %673 = vmatpush.msra.mxu0 %v602
    %674 = vmatpush.msra.mxu0 %v601
    %675 = vmatpush.msra.mxu0 %v600
    %676 = vmatpush.msra.mxu0 %v599
    %677 = vmatpush.msra.mxu0 %v598
    %678 = vmatpush.msra.mxu0 %v597
    %679 = vmatmul.f32.gmra.mxu0 %v634
    %v680 = vpop.f32.mrf.mxu0
    %v681 = vadd.f32 %v661, %v680
    %682 = vdwg.mxu0
    %683 = vmatpush.msra.mxu0 %v628
    %684 = vmatpush.msra.mxu0 %v627
    %685 = vmatpush.msra.mxu0 %v626
    %686 = vmatpush.msra.mxu0 %v625
    %687 = vmatpush.msra.mxu0 %v624
    %688 = vmatpush.msra.mxu0 %v623
    %689 = vmatpush.msra.mxu0 %v622
    %690 = vmatpush.msra.mxu0 %v621
    %691 = vmatpush.msra.mxu0 %v620
    %692 = vmatpush.msra.mxu0 %v619
    %693 = vmatpush.msra.mxu0 %v618
    %694 = vmatpush.msra.mxu0 %v617
    %695 = vmatpush.msra.mxu0 %v616
    %696 = vmatpush.msra.mxu0 %v615
    %697 = vmatpush.msra.mxu0 %v614
    %698 = vmatpush.msra.mxu0 %v613
    %699 = vmatmul.f32.gmra.mxu0 %v635
    %v700 = vpop.f32.mrf.mxu0
    %v701 = vadd.f32 %v681, %v700
    %702 = vdwg.mxu0
    %703 = vmatpush.msra.mxu0 0.0
    %704 = vmatpush.msra.mxu0 0.0
    %705 = vmatpush.msra.mxu0 0.0
    %706 = vmatpush.msra.mxu0 0.0
    %707 = vmatpush.msra.mxu0 0.0
    %708 = vmatpush.msra.mxu0 0.0
    %709 = vmatpush.msra.mxu0 0.0
    %710 = vmatpush.msra.mxu0 0.0
    %711 = vmatpush.msra.mxu0 0.0
    %712 = vmatpush.msra.mxu0 0.0
    %713 = vmatpush.msra.mxu0 0.0
    %714 = vmatpush.msra.mxu0 0.0
    %715 = vmatpush.msra.mxu0 0.0
    %716 = vmatpush.msra.mxu0 0.0
    %717 = vmatpush.msra.mxu0 0.0
    %718 = vmatpush.msra.mxu0 %v629
    %719 = vmatmul.f32.gmra.mxu0 %v641
    %v720 = vpop.f32.mrf.mxu0
    %v721 = vadd.f32 %v701, %v720
    %722 = vdwg.mxu0
    %vm723 = vcmask 58368
    %724 = vst.msk [vmem:[#allocation2] sm:$0x3] %vm723, %v721
    // Predicated region
    $region14: #{tpu_custom_call.1} parent=1 // pred_check
      _
    $region15: #{tpu_custom_call.1} parent=1 // pred_check_branch
      %726 = sbr.rel (0) target = $region17
    $region16: #{tpu_custom_call.1} parent=1 // pred_region
      %728 = vsyncadd [#allocation3], 0
      %s730 = sshll.u32 [#allocation2], 4
      %s731 = int_to_ptr.vmem [resolvable:$true] %s730
      %s732 = sshll.u32 %s3, 4
      %s733 = int_to_ptr.hbm [resolvable:$true] %s732
      %735 = dma.vmem_to_hbm [thread:$0]  %s731, 32, %s733, [#allocation3]
    $region17: #{tpu_custom_call.1} parent=1 // pred_fallthru
      _
    // Predicated region
    $region18: #{tpu_custom_call.1} parent=1 // pred_check
      _
    $region19: #{tpu_custom_call.1} parent=1 // pred_check_branch
      %737 = sbr.rel (0) target = $region21
    $region20: #{tpu_custom_call.1} parent=1 // pred_region
      %739 = dma.done [#allocation3], 32
    $region21: #{tpu_custom_call.1} parent=1 // pred_fallthru
      _
    %740 = vsyncpa [#allocation3], 1

</llo_original>
